<compile_context>
chip_gen: v6e
topology: v6e:2x2x1
jax: 0.10.0
libtpu: 0.0.40
codegen_flags: <defaults>
</compile_context>

<pallas_src>
import functools

import numpy as np
import jax
import jax.numpy as jnp
from jax import lax
from jax.experimental import pallas as pl
from jax.experimental.pallas import tpu as pltpu

_EPS = np.float32(1e-5)
_HALF_PI = np.float32(np.pi / 2.0)
_INV_HALF_PI = np.float32(2.0 / np.pi)
_LN20 = np.float32(np.log(20.0))


def _round8(n):
    return ((n + 7) // 8) * 8


def _recip(x):
    # EUP approximate reciprocal + one Newton-Raphson refinement (~f32 exact):
    # keeps the divides off the VALU without hurting the jacobian product.
    r = pl.reciprocal(x, approx=True)
    return r * (2.0 - x * r)


def _batchnorm_t(h, gamma, beta):
    # h: (features, B).  torch.nn.BatchNorm1d training mode: batch mean,
    # biased variance, eps=1e-5.  gamma/beta: (features, 1).
    mean = jnp.mean(h, axis=1, keepdims=True)
    var = jnp.mean((h - mean) ** 2, axis=1, keepdims=True)
    # Fuse gamma into the rsqrt on the (feat, 1) column before broadcasting:
    # one fewer full (feat, B) multiply per BatchNorm.
    scale = lax.rsqrt(var + _EPS) * gamma
    return (h - mean) * scale + beta


def _atan_f32(x):
    # float32 arctan via Cephes-style range reduction + odd minimax polynomial.
    # TODO(synk): Mosaic has no native lax.atan lowering; this matches
    # torch.atan to ~1-2 ulp in float32.  The two branch divides are fused
    # into a single (EUP) reciprocal.
    t = jnp.abs(x)
    big = t > 2.414213562373095        # tan(3*pi/8)
    mid = t > 0.4142135623730951       # tan(pi/8)
    y0 = jnp.where(big, _HALF_PI,
                   jnp.where(mid, np.float32(np.pi / 4.0), np.float32(0.0)))
    num = jnp.where(big, np.float32(-1.0), jnp.where(mid, t - 1.0, t))
    den = jnp.where(big, t, jnp.where(mid, t + 1.0, np.float32(1.0)))
    u = num * _recip(den)              # den >= 1 off the 'big' branch, > 2.4 on it
    z = u * u
    p = ((8.05374449538e-2 * z - 1.38776856032e-1) * z
         + 1.99777106478e-1) * z - 3.33329491539e-1
    r = y0 + (p * z * u + u)
    return jnp.where(x < 0.0, -r, r)


def _param_layout(flow_size, pass_through_size, nn_layers):
    """8-row-aligned offsets of every parameter block in the packed buffer."""
    P = pass_through_size
    T = flow_size - pass_through_size
    sizes = list(nn_layers) + [2 * T]
    blocks = []                        # (name, (rows, cols), row_offset)
    off = 0
    width = 1

    def add(name, rows, cols):
        nonlocal off, width
        blocks.append((name, (rows, cols), off))
        off += _round8(rows)
        width = max(width, cols)

    add("bn0_g", P, 1)
    add("bn0_b", P, 1)
    in_dim = P
    for i, out_dim in enumerate(sizes):
        add(f"W{i}", out_dim, in_dim)
        add(f"b{i}", out_dim, 1)
        if i < len(sizes) - 1:
            add(f"bn{i + 1}_g", out_dim, 1)
            add(f"bn{i + 1}_b", out_dim, 1)
        in_dim = out_dim
    return blocks, off, width


def pack_params(params, blocks, total_rows, width):
    buf = np.zeros((total_rows, width), np.float32)
    for name, (rows, cols), off in blocks:
        buf[off:off + rows, :cols] = np.asarray(params[name],
                                                np.float32).reshape(rows, cols)
    return jnp.asarray(buf)


def _make_kernel(flow_size, pass_through_size, nn_layers, blocks):
    P, F = pass_through_size, flow_size
    T = F - P
    sizes = list(nn_layers) + [2 * T]
    num_linear = len(sizes)
    offs = {name: (shape, off) for (name, shape, off) in blocks}

    def kernel(xT_ref, p_ref, out_ref):
        def param(name):
            (rows, cols), off = offs[name]
            # Static, 8-aligned row offset -> cheap sub-window load.
            return p_ref[pl.ds(off, rows), pl.ds(0, cols)]

        xT = xT_ref[...]                              # (F+1, B), batch on lanes
        xA = xT[:P, :]                                # (P, B)
        xB = xT[P:F, :]                               # (T, B)
        jac = xT[F:F + 1, :]                          # (1, B)

        # BatchNorm1d(pass_through_size) -> [Linear -> BN -> ReLU]* -> Linear
        h = _batchnorm_t(xA, param("bn0_g"), param("bn0_b"))
        for i in range(num_linear):
            W = param(f"W{i}")                        # (out, in)
            h = jnp.dot(W, h, preferred_element_type=jnp.float32)
            if i < num_linear - 1:
                # The Linear bias is a per-feature constant added right before
                # BatchNorm over the batch axis; it cancels exactly in
                # (h - mean(h)) and leaves the variance unchanged, so skip the
                # (out, B) broadcast-add.  Mathematically identical to torch.
                h = _batchnorm_t(h, param(f"bn{i + 1}_g"), param(f"bn{i + 1}_b"))
                h = jnp.maximum(h, 0.0)
            else:
                h = h + param(f"b{i}")                # last layer keeps its bias

        # Reshape(2, T): rows [0, T) -> rescale channel, rows [T, 2T) -> shift.
        s0_pre = h[:T, :]                             # (T, B)
        s1 = jnp.maximum(h[T:, :], 0.0)               # where(x>0, x, 0)
        scale = jnp.exp(s0_pre + _LN20)               # 20 * exp(s0), folded
        yB = xB * scale + s1
        diff = _recip(yB * yB + 1.0)
        yB_out = _atan_f32(yB) * _INV_HALF_PI

        # prod_j(20*exp(s0_j)) == exp(sum_j s0_j + T*ln20): one sublane-axis
        # sum + one EUP exp instead of T exps and T-1 multiplies.
        prod_scale = jnp.exp(jnp.sum(s0_pre, axis=0, keepdims=True)
                             + np.float32(T) * _LN20)
        # Product over the T transform rows: T is tiny & static, so a short
        # unrolled multiply of full-lane-width rows is cheapest (and avoids
        # relying on multiplicative axis-reductions in Mosaic).
        prod_diff = diff[0:1, :]
        for j in range(1, T):
            prod_diff = prod_diff * diff[j:j + 1, :]
        jac_out = jac * (prod_scale * _INV_HALF_PI) * prod_diff

        # With batch on lanes every store below is full-128-lane dense.
        out_ref[0:P, :] = xA
        out_ref[P:F, :] = yB_out
        out_ref[F:F + 1, :] = jac_out

    return kernel


@functools.lru_cache(maxsize=None)
def _build_forward(flow_size, pass_through_size, nn_layers, batch):
    """Build + jit the full forward (transpose -> pallas_call -> transpose) once."""
    blocks, total_rows, width = _param_layout(flow_size, pass_through_size,
                                              nn_layers)
    kernel = _make_kernel(flow_size, pass_through_size, nn_layers, blocks)
    call = pl.pallas_call(
        kernel,
        out_shape=jax.ShapeDtypeStruct((flow_size + 1, batch), jnp.float32),
        in_specs=[pl.BlockSpec(memory_space=pltpu.MemorySpace.VMEM),
                  pl.BlockSpec(memory_space=pltpu.MemorySpace.VMEM)],
        out_specs=pl.BlockSpec(memory_space=pltpu.MemorySpace.VMEM),
    )

    @jax.jit
    def forward(x, packed):
        xT = jnp.transpose(x)                  # (F+1, B): batch on the lane axis
        outT = call(xT, packed)
        return jnp.transpose(outT)             # back to (B, F+1)

    return forward, blocks, total_rows, width


def init_params(key, flow_size, pass_through_size, nn_layers):
    """torch-default-style init; Linear weights stored (out_features, in_features)."""
    P = pass_through_size
    T = flow_size - pass_through_size
    sizes = list(nn_layers) + [2 * T]
    params = {"bn0_g": jnp.ones((P,), jnp.float32),
              "bn0_b": jnp.zeros((P,), jnp.float32)}
    in_dim = P
    for i, out_dim in enumerate(sizes):
        key, kw, kb = jax.random.split(key, 3)
        bound = 1.0 / np.sqrt(in_dim)
        params[f"W{i}"] = jax.random.uniform(kw, (out_dim, in_dim),
                                             jnp.float32, -bound, bound)
        params[f"b{i}"] = jax.random.uniform(kb, (out_dim,),
                                             jnp.float32, -bound, bound)
        if i < len(sizes) - 1:
            params[f"bn{i + 1}_g"] = jnp.ones((out_dim,), jnp.float32)
            params[f"bn{i + 1}_b"] = jnp.zeros((out_dim,), jnp.float32)
        in_dim = out_dim
    return params


def affine_coupling_forward(x, params, flow_size, pass_through_size, nn_layers):
    # TODO(synk): a full normalizing flow should fuse several coupling cells
    # into one pallas_call to amortize launch overhead; this implements one cell.
    B = x.shape[0]
    forward, blocks, total_rows, width = _build_forward(
        flow_size, pass_through_size, tuple(nn_layers), B)
    packed = pack_params(params, blocks, total_rows, width)
    return forward(x, packed)


def reference_forward(x, params, flow_size, pass_through_size, nn_layers):
    """Pure-JAX reference mirroring the torch forward exactly."""
    P, F = pass_through_size, flow_size
    T = F - P
    sizes = list(nn_layers) + [2 * T]

    def bn(h, g, b):
        m = jnp.mean(h, axis=0)
        v = jnp.mean((h - m) ** 2, axis=0)
        return (h - m) / jnp.sqrt(v + _EPS) * g + b

    xA = x[:, :P]
    xB = x[:, P:F]
    jac = x[:, F]
    h = bn(xA, params["bn0_g"], params["bn0_b"])
    for i in range(len(sizes)):
        h = h @ params[f"W{i}"].T + params[f"b{i}"]
        if i < len(sizes) - 1:
            h = jnp.maximum(bn(h, params[f"bn{i + 1}_g"], params[f"bn{i + 1}_b"]),
                            0.0)
    s0 = jnp.exp(h[:, :T])
    s1 = jnp.where(h[:, T:] > 0.0, h[:, T:], 0.0)
    yB = xB * (20.0 * s0) + s1
    diff = 1.0 / (yB ** 2 + 1.0)
    yB_o = jnp.arctan(yB) / (np.pi / 2.0)
    jac_o = (jac * jnp.prod(20.0 * s0, axis=1)
             * (1.0 / (np.pi / 2.0)) * jnp.prod(diff, axis=1))
    return jnp.concatenate([xA, yB_o, jac_o[:, None]], axis=1)


if __name__ == "__main__":
    flow_size = 8
    pass_through_size = 4
    nn_layers = [32, 32]
    batch = 128        # exactly fills the 128-lane axis inside the kernel

    key = jax.random.PRNGKey(0)
    kx, kp = jax.random.split(key)
    x = jax.random.uniform(kx, (batch, flow_size + 1), jnp.float32, 0.1, 0.9)
    params = init_params(kp, flow_size, pass_through_size, nn_layers)

    out = affine_coupling_forward(x, params, flow_size, pass_through_size,
                                  nn_layers)
    out = jax.block_until_ready(out)

    ref = reference_forward(x, params, flow_size, pass_through_size, nn_layers)
    assert out.shape == (batch, flow_size + 1)
    assert np.allclose(np.asarray(out), np.asarray(ref), rtol=2e-2, atol=1e-3), \
        "Pallas kernel does not match reference"
    print("KERNEL_OK")
</pallas_src>

<mosaic_0001>
module attributes {stable_mosaic.version = 11 : i64} {
  func.func @kernel(%arg0: memref<9x128xf32, #tpu.memory_space<vmem>>, %arg1: memref<288x32xf32, #tpu.memory_space<vmem>>, %arg2: memref<9x128xf32, #tpu.memory_space<vmem>>) attributes {dimension_semantics = [], scalar_prefetch = 0 : i64, scratch_operands = 0 : i64, tpu.core_type = #tpu.core_type<tc>} {
    %c0 = arith.constant 0 : index
    %c0_0 = arith.constant 0 : index
    %0 = vector.load %arg0[%c0, %c0_0] : memref<9x128xf32, #tpu.memory_space<vmem>>, vector<9x128xf32>
    %1 = vector.extract_strided_slice %0 {offsets = [0, 0], sizes = [4, 128], strides = [1, 1]} : vector<9x128xf32> to vector<4x128xf32>
    %2 = vector.extract_strided_slice %0 {offsets = [4, 0], sizes = [4, 128], strides = [1, 1]} : vector<9x128xf32> to vector<4x128xf32>
    %3 = vector.extract_strided_slice %0 {offsets = [8, 0], sizes = [1, 128], strides = [1, 1]} : vector<9x128xf32> to vector<1x128xf32>
    %c0_1 = arith.constant 0 : index
    %c0_2 = arith.constant 0 : index
    %4 = vector.load %arg1[%c0_1, %c0_2] : memref<288x32xf32, #tpu.memory_space<vmem>>, vector<4x1xf32>
    %c8 = arith.constant 8 : index
    %c0_3 = arith.constant 0 : index
    %5 = vector.load %arg1[%c8, %c0_3] : memref<288x32xf32, #tpu.memory_space<vmem>>, vector<4x1xf32>
    %cst = arith.constant dense<0.000000e+00> : vector<4xf32>
    %6 = vector.multi_reduction <add>, %1, %cst [1] : vector<4x128xf32> to vector<4xf32>
    %7 = vector.shape_cast %6 : vector<4xf32> to vector<4x1xf32>
    %cst_4 = arith.constant 1.280000e+02 : f32
    %8 = vector.broadcast %cst_4 : f32 to vector<4x1xf32>
    %9 = arith.divf %7, %8 : vector<4x1xf32>
    %10 = vector.broadcast %9 : vector<4x1xf32> to vector<4x128xf32>
    %11 = arith.subf %1, %10 : vector<4x128xf32>
    %12 = arith.mulf %11, %11 : vector<4x128xf32>
    %cst_5 = arith.constant dense<0.000000e+00> : vector<4xf32>
    %13 = vector.multi_reduction <add>, %12, %cst_5 [1] : vector<4x128xf32> to vector<4xf32>
    %14 = vector.shape_cast %13 : vector<4xf32> to vector<4x1xf32>
    %cst_6 = arith.constant 1.280000e+02 : f32
    %15 = vector.broadcast %cst_6 : f32 to vector<4x1xf32>
    %16 = arith.divf %14, %15 : vector<4x1xf32>
    %cst_7 = arith.constant 9.99999974E-6 : f32
    %17 = vector.broadcast %cst_7 : f32 to vector<4x1xf32>
    %18 = arith.addf %16, %17 : vector<4x1xf32>
    %19 = math.rsqrt %18 : vector<4x1xf32>
    %20 = arith.mulf %19, %4 : vector<4x1xf32>
    %21 = vector.broadcast %9 : vector<4x1xf32> to vector<4x128xf32>
    %22 = arith.subf %1, %21 : vector<4x128xf32>
    %23 = vector.broadcast %20 : vector<4x1xf32> to vector<4x128xf32>
    %24 = arith.mulf %22, %23 : vector<4x128xf32>
    %25 = vector.broadcast %5 : vector<4x1xf32> to vector<4x128xf32>
    %26 = arith.addf %24, %25 : vector<4x128xf32>
    %c16 = arith.constant 16 : index
    %c0_8 = arith.constant 0 : index
    %27 = vector.load %arg1[%c16, %c0_8] : memref<288x32xf32, #tpu.memory_space<vmem>>, vector<32x4xf32>
    %cst_9 = arith.constant dense<0.000000e+00> : vector<32x128xf32>
    %28 = tpu.matmul %27, %26, %cst_9 {dimension_numbers = #tpu.dot_dimension_numbers<[1], [0], [0], [1], [0, 0, 1, 1], [], []>} : vector<32x4xf32>, vector<4x128xf32>, vector<32x128xf32> -> vector<32x128xf32>
    %c80 = arith.constant 80 : index
    %c0_10 = arith.constant 0 : index
    %29 = vector.load %arg1[%c80, %c0_10] : memref<288x32xf32, #tpu.memory_space<vmem>>, vector<32x1xf32>
    %c112 = arith.constant 112 : index
    %c0_11 = arith.constant 0 : index
    %30 = vector.load %arg1[%c112, %c0_11] : memref<288x32xf32, #tpu.memory_space<vmem>>, vector<32x1xf32>
    %cst_12 = arith.constant dense<0.000000e+00> : vector<32xf32>
    %31 = vector.multi_reduction <add>, %28, %cst_12 [1] : vector<32x128xf32> to vector<32xf32>
    %32 = vector.shape_cast %31 : vector<32xf32> to vector<32x1xf32>
    %cst_13 = arith.constant 1.280000e+02 : f32
    %33 = vector.broadcast %cst_13 : f32 to vector<32x1xf32>
    %34 = arith.divf %32, %33 : vector<32x1xf32>
    %35 = vector.broadcast %34 : vector<32x1xf32> to vector<32x128xf32>
    %36 = arith.subf %28, %35 : vector<32x128xf32>
    %37 = arith.mulf %36, %36 : vector<32x128xf32>
    %cst_14 = arith.constant dense<0.000000e+00> : vector<32xf32>
    %38 = vector.multi_reduction <add>, %37, %cst_14 [1] : vector<32x128xf32> to vector<32xf32>
    %39 = vector.shape_cast %38 : vector<32xf32> to vector<32x1xf32>
    %cst_15 = arith.constant 1.280000e+02 : f32
    %40 = vector.broadcast %cst_15 : f32 to vector<32x1xf32>
    %41 = arith.divf %39, %40 : vector<32x1xf32>
    %cst_16 = arith.constant 9.99999974E-6 : f32
    %42 = vector.broadcast %cst_16 : f32 to vector<32x1xf32>
    %43 = arith.addf %41, %42 : vector<32x1xf32>
    %44 = math.rsqrt %43 : vector<32x1xf32>
    %45 = arith.mulf %44, %29 : vector<32x1xf32>
    %46 = vector.broadcast %34 : vector<32x1xf32> to vector<32x128xf32>
    %47 = arith.subf %28, %46 : vector<32x128xf32>
    %48 = vector.broadcast %45 : vector<32x1xf32> to vector<32x128xf32>
    %49 = arith.mulf %47, %48 : vector<32x128xf32>
    %50 = vector.broadcast %30 : vector<32x1xf32> to vector<32x128xf32>
    %51 = arith.addf %49, %50 : vector<32x128xf32>
    %cst_17 = arith.constant 0.000000e+00 : f32
    %52 = vector.broadcast %cst_17 : f32 to vector<32x128xf32>
    %53 = arith.maximumf %51, %52 : vector<32x128xf32>
    %c144 = arith.constant 144 : index
    %c0_18 = arith.constant 0 : index
    %54 = vector.load %arg1[%c144, %c0_18] : memref<288x32xf32, #tpu.memory_space<vmem>>, vector<32x32xf32>
    %cst_19 = arith.constant dense<0.000000e+00> : vector<32x128xf32>
    %55 = tpu.matmul %54, %53, %cst_19 {dimension_numbers = #tpu.dot_dimension_numbers<[1], [0], [0], [1], [0, 0, 1, 1], [], []>} : vector<32x32xf32>, vector<32x128xf32>, vector<32x128xf32> -> vector<32x128xf32>
    %c208 = arith.constant 208 : index
    %c0_20 = arith.constant 0 : index
    %56 = vector.load %arg1[%c208, %c0_20] : memref<288x32xf32, #tpu.memory_space<vmem>>, vector<32x1xf32>
    %c240 = arith.constant 240 : index
    %c0_21 = arith.constant 0 : index
    %57 = vector.load %arg1[%c240, %c0_21] : memref<288x32xf32, #tpu.memory_space<vmem>>, vector<32x1xf32>
    %cst_22 = arith.constant dense<0.000000e+00> : vector<32xf32>
    %58 = vector.multi_reduction <add>, %55, %cst_22 [1] : vector<32x128xf32> to vector<32xf32>
    %59 = vector.shape_cast %58 : vector<32xf32> to vector<32x1xf32>
    %cst_23 = arith.constant 1.280000e+02 : f32
    %60 = vector.broadcast %cst_23 : f32 to vector<32x1xf32>
    %61 = arith.divf %59, %60 : vector<32x1xf32>
    %62 = vector.broadcast %61 : vector<32x1xf32> to vector<32x128xf32>
    %63 = arith.subf %55, %62 : vector<32x128xf32>
    %64 = arith.mulf %63, %63 : vector<32x128xf32>
    %cst_24 = arith.constant dense<0.000000e+00> : vector<32xf32>
    %65 = vector.multi_reduction <add>, %64, %cst_24 [1] : vector<32x128xf32> to vector<32xf32>
    %66 = vector.shape_cast %65 : vector<32xf32> to vector<32x1xf32>
    %cst_25 = arith.constant 1.280000e+02 : f32
    %67 = vector.broadcast %cst_25 : f32 to vector<32x1xf32>
    %68 = arith.divf %66, %67 : vector<32x1xf32>
    %cst_26 = arith.constant 9.99999974E-6 : f32
    %69 = vector.broadcast %cst_26 : f32 to vector<32x1xf32>
    %70 = arith.addf %68, %69 : vector<32x1xf32>
    %71 = math.rsqrt %70 : vector<32x1xf32>
    %72 = arith.mulf %71, %56 : vector<32x1xf32>
    %73 = vector.broadcast %61 : vector<32x1xf32> to vector<32x128xf32>
    %74 = arith.subf %55, %73 : vector<32x128xf32>
    %75 = vector.broadcast %72 : vector<32x1xf32> to vector<32x128xf32>
    %76 = arith.mulf %74, %75 : vector<32x128xf32>
    %77 = vector.broadcast %57 : vector<32x1xf32> to vector<32x128xf32>
    %78 = arith.addf %76, %77 : vector<32x128xf32>
    %cst_27 = arith.constant 0.000000e+00 : f32
    %79 = vector.broadcast %cst_27 : f32 to vector<32x128xf32>
    %80 = arith.maximumf %78, %79 : vector<32x128xf32>
    %c272 = arith.constant 272 : index
    %c0_28 = arith.constant 0 : index
    %81 = vector.load %arg1[%c272, %c0_28] : memref<288x32xf32, #tpu.memory_space<vmem>>, vector<8x32xf32>
    %cst_29 = arith.constant dense<0.000000e+00> : vector<8x128xf32>
    %82 = tpu.matmul %81, %80, %cst_29 {dimension_numbers = #tpu.dot_dimension_numbers<[1], [0], [0], [1], [0, 0, 1, 1], [], []>} : vector<8x32xf32>, vector<32x128xf32>, vector<8x128xf32> -> vector<8x128xf32>
    %c280 = arith.constant 280 : index
    %c0_30 = arith.constant 0 : index
    %83 = vector.load %arg1[%c280, %c0_30] : memref<288x32xf32, #tpu.memory_space<vmem>>, vector<8x1xf32>
    %84 = vector.broadcast %83 : vector<8x1xf32> to vector<8x128xf32>
    %85 = arith.addf %82, %84 : vector<8x128xf32>
    %86 = vector.extract_strided_slice %85 {offsets = [0, 0], sizes = [4, 128], strides = [1, 1]} : vector<8x128xf32> to vector<4x128xf32>
    %87 = vector.extract_strided_slice %85 {offsets = [4, 0], sizes = [4, 128], strides = [1, 1]} : vector<8x128xf32> to vector<4x128xf32>
    %cst_31 = arith.constant 0.000000e+00 : f32
    %88 = vector.broadcast %cst_31 : f32 to vector<4x128xf32>
    %89 = arith.maximumf %87, %88 : vector<4x128xf32>
    %cst_32 = arith.constant 2.99573231 : f32
    %90 = vector.broadcast %cst_32 : f32 to vector<4x128xf32>
    %91 = arith.addf %86, %90 : vector<4x128xf32>
    %92 = math.exp %91 : vector<4x128xf32>
    %93 = arith.mulf %2, %92 : vector<4x128xf32>
    %94 = arith.addf %93, %89 : vector<4x128xf32>
    %95 = arith.mulf %94, %94 : vector<4x128xf32>
    %cst_33 = arith.constant 1.000000e+00 : f32
    %96 = vector.broadcast %cst_33 : f32 to vector<4x128xf32>
    %97 = arith.addf %95, %96 : vector<4x128xf32>
    %98 = tpu.reciprocal %97 {approx = true} : vector<4x128xf32> -> vector<4x128xf32>
    %99 = arith.mulf %97, %98 : vector<4x128xf32>
    %cst_34 = arith.constant 2.000000e+00 : f32
    %100 = vector.broadcast %cst_34 : f32 to vector<4x128xf32>
    %101 = arith.subf %100, %99 : vector<4x128xf32>
    %102 = arith.mulf %98, %101 : vector<4x128xf32>
    %103 = math.absf %94 : vector<4x128xf32>
    %cst_35 = arith.constant 2.41421366 : f32
    %104 = vector.broadcast %cst_35 : f32 to vector<4x128xf32>
    %105 = arith.cmpf ogt, %103, %104 : vector<4x128xf32>
    %cst_36 = arith.constant 0.414213568 : f32
    %106 = vector.broadcast %cst_36 : f32 to vector<4x128xf32>
    %107 = arith.cmpf ogt, %103, %106 : vector<4x128xf32>
    %cst_37 = arith.constant 0.785398185 : f32
    %cst_38 = arith.constant 0.000000e+00 : f32
    %108 = vector.broadcast %cst_37 : f32 to vector<4x128xf32>
    %109 = vector.broadcast %cst_38 : f32 to vector<4x128xf32>
    %110 = arith.select %107, %108, %109 : vector<4x128xi1>, vector<4x128xf32>
    %cst_39 = arith.constant 1.57079637 : f32
    %111 = vector.broadcast %cst_39 : f32 to vector<4x128xf32>
    %112 = arith.select %105, %111, %110 : vector<4x128xi1>, vector<4x128xf32>
    %cst_40 = arith.constant 1.000000e+00 : f32
    %113 = vector.broadcast %cst_40 : f32 to vector<4x128xf32>
    %114 = arith.subf %103, %113 : vector<4x128xf32>
    %115 = arith.select %107, %114, %103 : vector<4x128xi1>, vector<4x128xf32>
    %cst_41 = arith.constant -1.000000e+00 : f32
    %116 = vector.broadcast %cst_41 : f32 to vector<4x128xf32>
    %117 = arith.select %105, %116, %115 : vector<4x128xi1>, vector<4x128xf32>
    %cst_42 = arith.constant 1.000000e+00 : f32
    %118 = vector.broadcast %cst_42 : f32 to vector<4x128xf32>
    %119 = arith.addf %103, %118 : vector<4x128xf32>
    %cst_43 = arith.constant 1.000000e+00 : f32
    %120 = vector.broadcast %cst_43 : f32 to vector<4x128xf32>
    %121 = arith.select %107, %119, %120 : vector<4x128xi1>, vector<4x128xf32>
    %122 = arith.select %105, %103, %121 : vector<4x128xi1>, vector<4x128xf32>
    %123 = tpu.reciprocal %122 {approx = true} : vector<4x128xf32> -> vector<4x128xf32>
    %124 = arith.mulf %122, %123 : vector<4x128xf32>
    %cst_44 = arith.constant 2.000000e+00 : f32
    %125 = vector.broadcast %cst_44 : f32 to vector<4x128xf32>
    %126 = arith.subf %125, %124 : vector<4x128xf32>
    %127 = arith.mulf %123, %126 : vector<4x128xf32>
    %128 = arith.mulf %117, %127 : vector<4x128xf32>
    %129 = arith.mulf %128, %128 : vector<4x128xf32>
    %cst_45 = arith.constant 0.0805374458 : f32
    %130 = vector.broadcast %cst_45 : f32 to vector<4x128xf32>
    %131 = arith.mulf %130, %129 : vector<4x128xf32>
    %cst_46 = arith.constant 0.138776854 : f32
    %132 = vector.broadcast %cst_46 : f32 to vector<4x128xf32>
    %133 = arith.subf %131, %132 : vector<4x128xf32>
    %134 = arith.mulf %133, %129 : vector<4x128xf32>
    %cst_47 = arith.constant 0.199777111 : f32
    %135 = vector.broadcast %cst_47 : f32 to vector<4x128xf32>
    %136 = arith.addf %134, %135 : vector<4x128xf32>
    %137 = arith.mulf %136, %129 : vector<4x128xf32>
    %cst_48 = arith.constant 0.333329499 : f32
    %138 = vector.broadcast %cst_48 : f32 to vector<4x128xf32>
    %139 = arith.subf %137, %138 : vector<4x128xf32>
    %140 = arith.mulf %139, %129 : vector<4x128xf32>
    %141 = arith.mulf %140, %128 : vector<4x128xf32>
    %142 = arith.addf %141, %128 : vector<4x128xf32>
    %143 = arith.addf %112, %142 : vector<4x128xf32>
    %cst_49 = arith.constant 0.000000e+00 : f32
    %144 = vector.broadcast %cst_49 : f32 to vector<4x128xf32>
    %145 = arith.cmpf olt, %94, %144 : vector<4x128xf32>
    %cst_50 = arith.constant 0.000000e+00 : f32
    %146 = vector.broadcast %cst_50 : f32 to vector<4x128xf32>
    %147 = arith.subf %146, %143 : vector<4x128xf32>
    %148 = arith.select %145, %147, %143 : vector<4x128xi1>, vector<4x128xf32>
    %cst_51 = arith.constant 0.636619746 : f32
    %149 = vector.broadcast %cst_51 : f32 to vector<4x128xf32>
    %150 = arith.mulf %148, %149 : vector<4x128xf32>
    %cst_52 = arith.constant dense<0.000000e+00> : vector<128xf32>
    %151 = vector.multi_reduction <add>, %86, %cst_52 [0] : vector<4x128xf32> to vector<128xf32>
    %152 = vector.shape_cast %151 : vector<128xf32> to vector<1x128xf32>
    %cst_53 = arith.constant 11.9829292 : f32
    %153 = vector.broadcast %cst_53 : f32 to vector<1x128xf32>
    %154 = arith.addf %152, %153 : vector<1x128xf32>
    %155 = math.exp %154 : vector<1x128xf32>
    %156 = vector.extract_strided_slice %102 {offsets = [0, 0], sizes = [1, 128], strides = [1, 1]} : vector<4x128xf32> to vector<1x128xf32>
    %157 = vector.extract_strided_slice %102 {offsets = [1, 0], sizes = [1, 128], strides = [1, 1]} : vector<4x128xf32> to vector<1x128xf32>
    %158 = arith.mulf %156, %157 : vector<1x128xf32>
    %159 = vector.extract_strided_slice %102 {offsets = [2, 0], sizes = [1, 128], strides = [1, 1]} : vector<4x128xf32> to vector<1x128xf32>
    %160 = arith.mulf %158, %159 : vector<1x128xf32>
    %161 = vector.extract_strided_slice %102 {offsets = [3, 0], sizes = [1, 128], strides = [1, 1]} : vector<4x128xf32> to vector<1x128xf32>
    %162 = arith.mulf %160, %161 : vector<1x128xf32>
    %cst_54 = arith.constant 0.636619746 : f32
    %163 = vector.broadcast %cst_54 : f32 to vector<1x128xf32>
    %164 = arith.mulf %155, %163 : vector<1x128xf32>
    %165 = arith.mulf %3, %164 : vector<1x128xf32>
    %166 = arith.mulf %165, %162 : vector<1x128xf32>
    %c0_55 = arith.constant 0 : index
    %c0_56 = arith.constant 0 : index
    %167 = vector.load %arg2[%c0_55, %c0_56] : memref<9x128xf32, #tpu.memory_space<vmem>>, vector<4x128xf32>
    tpu.vector_store %arg2[%c0_55, %c0_56], %1 {strides = array<i32>} : memref<9x128xf32, #tpu.memory_space<vmem>>, vector<4x128xf32>,
    %c4 = arith.constant 4 : index
    %c0_57 = arith.constant 0 : index
    %168 = vector.load %arg2[%c4, %c0_57] : memref<9x128xf32, #tpu.memory_space<vmem>>, vector<4x128xf32>
    tpu.vector_store %arg2[%c4, %c0_57], %150 {strides = array<i32>} : memref<9x128xf32, #tpu.memory_space<vmem>>, vector<4x128xf32>,
    %c8_58 = arith.constant 8 : index
    %c0_59 = arith.constant 0 : index
    %169 = vector.load %arg2[%c8_58, %c0_59] : memref<9x128xf32, #tpu.memory_space<vmem>>, vector<1x128xf32>
    tpu.vector_store %arg2[%c8_58, %c0_59], %166 {strides = array<i32>} : memref<9x128xf32, #tpu.memory_space<vmem>>, vector<1x128xf32>,
    return
  }
}

</mosaic_0001>

<llo_original>
// kernel: forward.1
$region0: #{forward.1}
  #allocation0 [shape = 'u32[]', space=smem, size = 0x4, offset = 0x4, fixed_abs, tag = 'smem constant byte address 0x4 - core index']
  #allocation1 [shape = 'u32[144,128]{1,0:T(1,128)}', space=vmem, size = 0x12000, scoped, tag = 'internal scratch']
  %s0 = inlined_call_operand.vmem [shape: f32[9,128], index: 0, kind: input, shape index: {}]
  %s1 = inlined_call_operand.vmem [shape: f32[288,32], index: 1, kind: input, shape index: {}]
  %s2 = inlined_call_operand.hbm [shape: f32[9,128], index: 2, kind: output, shape index: {}]
  %s3 = sld [smem:[#allocation0]]
  $region18: #{forward.1} parent=0
    _
  %s5 = ssub.s32 1, %s3
  %s6 = scalar_select 0, %s5, %s3
  $region1: #{forward.1} parent=0
    #allocation2 [shape = 'u8[8192]{0}', space=vmem, size = 0x2000, scoped, tag = 'output window, operand 0, single buffered']
    #allocation3 [shape = 's32[1]{0}', space=sflag, size = 0x4, scoped, tag = 'scoped memory for forward.1']
    %7 = vsyncpa [#allocation3], 0
    // Predicated region
    $region2: #{forward.1} parent=1 // pred_check
      _
    $region3: #{forward.1} parent=1 // pred_check_branch
      %9 = sbr.rel (0) target = $region5
    $region4: #{forward.1} parent=1 // pred_region
      _
    $region5: #{forward.1} parent=1 // pred_fallthru
      _
    // Predicated region
    $region6: #{forward.1} parent=1 // pred_check
      _
    $region7: #{forward.1} parent=1 // pred_check_branch
      %11 = sbr.rel (0) target = $region9
    $region8: #{forward.1} parent=1 // pred_region
      _
    $region9: #{forward.1} parent=1 // pred_fallthru
      _
    %v12 = vld [vmem:[%s0] sm:$0xff]
    %v13 = vld [vmem:[%s0 + $0x8] sm:$0x1]
    %v14 = vld [vmem:[%s1] sm:$0xf]
    %v15 = vld [vmem:[%s1 + $0x8] sm:$0xf]
    %vm16 = vcmask 1043456
    %v17 = vsel %vm16, %v12, 0.0
    %18 = vadd.xlane.f32.xlu0 %v17
    %v19 = vpop.xlane.xlu0 %18
    %v20 = vrcp.pop 128.0
    %v21 = vmul.f32 %v19, %v20
    %v22 = vsub.f32 %v12, %v21
    %v23 = vmul.f32 %v22, %v22
    %v24 = vsel %vm16, %v23, 0.0
    %25 = vadd.xlane.f32.xlu0 %v24
    %v26 = vpop.xlane.xlu0 %25
    %v27 = vmul.f32 %v26, %v20
    %v28 = vadd.f32 %v27, 1e-05
    %v29 = vrsqrt.pop %v28
    %v30 = vmul.f32 %v29, %v14
    %32 = vset.pattern.permute.xlu0 0
    %33 = vperm.xlu0 %32, %v30
    %v34 = vpop.permute.xlu0 %33
    %v36 = vmul.f32 %v22, %v34
    %38 = vset.pattern.permute.xlu0 0
    %39 = vperm.xlu0 %38, %v15
    %v40 = vpop.permute.xlu0 %39
    %v42 = vadd.f32 %v36, %v40
    %v43 = vld [vmem:[%s1 + $0x10] sm:$0xff]
    %v44 = vld [vmem:[%s1 + $0x18] sm:$0xff]
    %v45 = vld [vmem:[%s1 + $0x20] sm:$0xff]
    %v46 = vld [vmem:[%s1 + $0x28] sm:$0xff]
    %vm47 = vcmask 31744
    %v49 = vsel %vm47, %v43, 0
    %v52 = vsel %vm47, %v44, 0
    %v55 = vsel %vm47, %v45, 0
    %v58 = vsel %vm47, %v46, 0
    %v61 = vsel %vm16, %v42, 0
    %63 = vmatprep.subr.mxu0 0.0
    %64 = vmatpush1.msra.mxu0 0.0
    %65 = vmatprep.subr.mxu0 0.0
    %66 = vmatpush1.msra.mxu0 0.0
    %67 = vmatprep.subr.mxu0 0.0
    %68 = vmatpush1.msra.mxu0 0.0
    %69 = vmatprep.subr.mxu0 0.0
    %70 = vmatpush1.msra.mxu0 0.0
    %71 = vmatprep.subr.mxu0 0.0
    %72 = vmatpush1.msra.mxu0 0.0
    %73 = vmatprep.subr.mxu0 0.0
    %74 = vmatpush1.msra.mxu0 0.0
    %75 = vmatprep.subr.mxu0 0.0
    %76 = vmatpush1.msra.mxu0 0.0
    %77 = vmatprep.subr.mxu0 0.0
    %78 = vmatpush1.msra.mxu0 0.0
    %79 = vmatprep.subr.mxu0 0.0
    %80 = vmatpush1.msra.mxu0 0.0
    %81 = vmatprep.subr.mxu0 0.0
    %82 = vmatpush1.msra.mxu0 0.0
    %83 = vmatprep.subr.mxu0 0.0
    %84 = vmatpush1.msra.mxu0 0.0
    %85 = vmatprep.subr.mxu0 0.0
    %86 = vmatpush1.msra.mxu0 0.0
    %87 = vmatprep.subr.mxu0 0.0
    %88 = vmatpush1.msra.mxu0 0.0
    %89 = vmatprep.subr.mxu0 0.0
    %90 = vmatpush1.msra.mxu0 0.0
    %91 = vmatprep.subr.mxu0 0.0
    %92 = vmatpush1.msra.mxu0 0.0
    %93 = vmatprep.subr.mxu0 0.0
    %94 = vmatpush1.msra.mxu0 %v61
    %95 = vmatprep.subr.mxu0 0.0
    %96 = vmatpush2.msra.mxu0 0.0
    %97 = vmatprep.subr.mxu0 0.0
    %98 = vmatpush2.msra.mxu0 0.0
    %99 = vmatprep.subr.mxu0 0.0
    %100 = vmatpush2.msra.mxu0 0.0
    %101 = vmatprep.subr.mxu0 0.0
    %102 = vmatpush2.msra.mxu0 0.0
    %103 = vmatprep.subr.mxu0 0.0
    %104 = vmatpush2.msra.mxu0 0.0
    %105 = vmatprep.subr.mxu0 0.0
    %106 = vmatpush2.msra.mxu0 0.0
    %107 = vmatprep.subr.mxu0 0.0
    %108 = vmatpush2.msra.mxu0 0.0
    %109 = vmatprep.subr.mxu0 0.0
    %110 = vmatpush2.msra.mxu0 0.0
    %111 = vmatprep.subr.mxu0 0.0
    %112 = vmatpush2.msra.mxu0 0.0
    %113 = vmatprep.subr.mxu0 0.0
    %114 = vmatpush2.msra.mxu0 0.0
    %115 = vmatprep.subr.mxu0 0.0
    %116 = vmatpush2.msra.mxu0 0.0
    %117 = vmatprep.subr.mxu0 0.0
    %118 = vmatpush2.msra.mxu0 0.0
    %119 = vmatprep.subr.mxu0 0.0
    %120 = vmatpush2.msra.mxu0 0.0
    %121 = vmatprep.subr.mxu0 0.0
    %122 = vmatpush2.msra.mxu0 0.0
    %123 = vmatprep.subr.mxu0 0.0
    %124 = vmatpush2.msra.mxu0 0.0
    %125 = vmatprep.subr.mxu0 0.0
    %126 = vmatpush2.msra.mxu0 0.0
    %127 = vmatprep.mubr.f32.mxu0 0.0
    %128 = vmatmul.mubr.f32.gmra.mxu0 %v49
    %v129 = vpop.f32.mrf.mxu0
    %v130 = vadd.f32 0.0, %v129
    %v131 = vpop.f32.mrf.mxu0
    %132 = vmatprep.mubr.f32.mxu0 0.0
    %133 = vmatmul.mubr.f32.gmra.mxu0 %v52
    %v134 = vpop.f32.mrf.mxu0
    %v135 = vadd.f32 0.0, %v134
    %v136 = vpop.f32.mrf.mxu0
    %137 = vmatprep.mubr.f32.mxu0 0.0
    %138 = vmatmul.mubr.f32.gmra.mxu0 %v55
    %v139 = vpop.f32.mrf.mxu0
    %v140 = vadd.f32 0.0, %v139
    %v141 = vpop.f32.mrf.mxu0
    %142 = vmatprep.mubr.f32.mxu0 0.0
    %143 = vmatmul.mubr.f32.gmra.mxu0 %v58
    %v144 = vpop.f32.mrf.mxu0
    %v145 = vadd.f32 0.0, %v144
    %v146 = vpop.f32.mrf.mxu0
    %147 = vdwg.mxu0
    %v148 = vld [vmem:[%s1 + $0x50] sm:$0xff]
    %v149 = vld [vmem:[%s1 + $0x58] sm:$0xff]
    %v150 = vld [vmem:[%s1 + $0x60] sm:$0xff]
    %v151 = vld [vmem:[%s1 + $0x68] sm:$0xff]
    %v152 = vld [vmem:[%s1 + $0x70] sm:$0xff]
    %v153 = vld [vmem:[%s1 + $0x78] sm:$0xff]
    %v154 = vld [vmem:[%s1 + $0x80] sm:$0xff]
    %v155 = vld [vmem:[%s1 + $0x88] sm:$0xff]
    %156 = vadd.xlane.f32.xlu0 %v130
    %v157 = vpop.xlane.xlu0 %156
    %158 = vadd.xlane.f32.xlu0 %v135
    %v159 = vpop.xlane.xlu0 %158
    %160 = vadd.xlane.f32.xlu0 %v140
    %v161 = vpop.xlane.xlu0 %160
    %162 = vadd.xlane.f32.xlu0 %v145
    %v163 = vpop.xlane.xlu0 %162
    %v164 = vmul.f32 %v157, %v20
    %v165 = vmul.f32 %v159, %v20
    %v166 = vmul.f32 %v161, %v20
    %v167 = vmul.f32 %v163, %v20
    %v168 = vsub.f32 %v130, %v164
    %v169 = vsub.f32 %v135, %v165
    %v170 = vsub.f32 %v140, %v166
    %v171 = vsub.f32 %v145, %v167
    %v172 = vmul.f32 %v168, %v168
    %v173 = vmul.f32 %v169, %v169
    %v174 = vmul.f32 %v170, %v170
    %v175 = vmul.f32 %v171, %v171
    %176 = vadd.xlane.f32.xlu0 %v172
    %v177 = vpop.xlane.xlu0 %176
    %178 = vadd.xlane.f32.xlu0 %v173
    %v179 = vpop.xlane.xlu0 %178
    %180 = vadd.xlane.f32.xlu0 %v174
    %v181 = vpop.xlane.xlu0 %180
    %182 = vadd.xlane.f32.xlu0 %v175
    %v183 = vpop.xlane.xlu0 %182
    %v184 = vmul.f32 %v177, %v20
    %v185 = vmul.f32 %v179, %v20
    %v186 = vmul.f32 %v181, %v20
    %v187 = vmul.f32 %v183, %v20
    %v188 = vadd.f32 %v184, 1e-05
    %v189 = vadd.f32 %v185, 1e-05
    %v190 = vadd.f32 %v186, 1e-05
    %v191 = vadd.f32 %v187, 1e-05
    %v192 = vrsqrt.pop %v188
    %v193 = vrsqrt.pop %v189
    %v194 = vrsqrt.pop %v190
    %v195 = vrsqrt.pop %v191
    %v196 = vmul.f32 %v192, %v148
    %v197 = vmul.f32 %v193, %v149
    %v198 = vmul.f32 %v194, %v150
    %v199 = vmul.f32 %v195, %v151
    %201 = vset.pattern.permute.xlu0 0
    %202 = vperm.xlu0 %201, %v196
    %v203 = vpop.permute.xlu0 %202
    %206 = vset.pattern.permute.xlu0 0
    %207 = vperm.xlu0 %206, %v197
    %v208 = vpop.permute.xlu0 %207
    %211 = vset.pattern.permute.xlu0 0
    %212 = vperm.xlu0 %211, %v198
    %v213 = vpop.permute.xlu0 %212
    %216 = vset.pattern.permute.xlu0 0
    %217 = vperm.xlu0 %216, %v199
    %v218 = vpop.permute.xlu0 %217
    %v220 = vmul.f32 %v168, %v203
    %v221 = vmul.f32 %v169, %v208
    %v222 = vmul.f32 %v170, %v213
    %v223 = vmul.f32 %v171, %v218
    %225 = vset.pattern.permute.xlu0 0
    %226 = vperm.xlu0 %225, %v152
    %v227 = vpop.permute.xlu0 %226
    %230 = vset.pattern.permute.xlu0 0
    %231 = vperm.xlu0 %230, %v153
    %v232 = vpop.permute.xlu0 %231
    %235 = vset.pattern.permute.xlu0 0
    %236 = vperm.xlu0 %235, %v154
    %v237 = vpop.permute.xlu0 %236
    %240 = vset.pattern.permute.xlu0 0
    %241 = vperm.xlu0 %240, %v155
    %v242 = vpop.permute.xlu0 %241
    %v244 = vadd.f32 %v220, %v227
    %v245 = vadd.f32 %v221, %v232
    %v246 = vadd.f32 %v222, %v237
    %v247 = vadd.f32 %v223, %v242
    %v248 = vmax.f32 %v244, 0.0
    %v249 = vmax.f32 %v245, 0.0
    %v250 = vmax.f32 %v246, 0.0
    %v251 = vmax.f32 %v247, 0.0
    %v252 = vld [vmem:[%s1 + $0x90] sm:$0xff]
    %v253 = vld [vmem:[%s1 + $0x98] sm:$0xff]
    %v254 = vld [vmem:[%s1 + $0xa0] sm:$0xff]
    %v255 = vld [vmem:[%s1 + $0xa8] sm:$0xff]
    %vm256 = vcmask 261120
    %v258 = vsel %vm256, %v252, 0
    %v261 = vsel %vm256, %v253, 0
    %v264 = vsel %vm256, %v254, 0
    %v267 = vsel %vm256, %v255, 0
    %269 = vmatprep.subr.mxu0 0.0
    %270 = vmatpush1.msra.mxu0 0.0
    %271 = vmatprep.subr.mxu0 0.0
    %272 = vmatpush1.msra.mxu0 0.0
    %273 = vmatprep.subr.mxu0 0.0
    %274 = vmatpush1.msra.mxu0 0.0
    %275 = vmatprep.subr.mxu0 0.0
    %276 = vmatpush1.msra.mxu0 0.0
    %277 = vmatprep.subr.mxu0 0.0
    %278 = vmatpush1.msra.mxu0 0.0
    %279 = vmatprep.subr.mxu0 0.0
    %280 = vmatpush1.msra.mxu0 0.0
    %281 = vmatprep.subr.mxu0 0.0
    %282 = vmatpush1.msra.mxu0 0.0
    %283 = vmatprep.subr.mxu0 0.0
    %284 = vmatpush1.msra.mxu0 0.0
    %285 = vmatprep.subr.mxu0 0.0
    %286 = vmatpush1.msra.mxu0 0.0
    %287 = vmatprep.subr.mxu0 0.0
    %288 = vmatpush1.msra.mxu0 0.0
    %289 = vmatprep.subr.mxu0 0.0
    %290 = vmatpush1.msra.mxu0 0.0
    %291 = vmatprep.subr.mxu0 0.0
    %292 = vmatpush1.msra.mxu0 0.0
    %293 = vmatprep.subr.mxu0 0.0
    %294 = vmatpush1.msra.mxu0 %v251
    %295 = vmatprep.subr.mxu0 0.0
    %296 = vmatpush1.msra.mxu0 %v250
    %297 = vmatprep.subr.mxu0 0.0
    %298 = vmatpush1.msra.mxu0 %v249
    %299 = vmatprep.subr.mxu0 0.0
    %300 = vmatpush1.msra.mxu0 %v248
    %301 = vmatprep.subr.mxu0 0.0
    %302 = vmatpush2.msra.mxu0 0.0
    %303 = vmatprep.subr.mxu0 0.0
    %304 = vmatpush2.msra.mxu0 0.0
    %305 = vmatprep.subr.mxu0 0.0
    %306 = vmatpush2.msra.mxu0 0.0
    %307 = vmatprep.subr.mxu0 0.0
    %308 = vmatpush2.msra.mxu0 0.0
    %309 = vmatprep.subr.mxu0 0.0
    %310 = vmatpush2.msra.mxu0 0.0
    %311 = vmatprep.subr.mxu0 0.0
    %312 = vmatpush2.msra.mxu0 0.0
    %313 = vmatprep.subr.mxu0 0.0
    %314 = vmatpush2.msra.mxu0 0.0
    %315 = vmatprep.subr.mxu0 0.0
    %316 = vmatpush2.msra.mxu0 0.0
    %317 = vmatprep.subr.mxu0 0.0
    %318 = vmatpush2.msra.mxu0 0.0
    %319 = vmatprep.subr.mxu0 0.0
    %320 = vmatpush2.msra.mxu0 0.0
    %321 = vmatprep.subr.mxu0 0.0
    %322 = vmatpush2.msra.mxu0 0.0
    %323 = vmatprep.subr.mxu0 0.0
    %324 = vmatpush2.msra.mxu0 0.0
    %325 = vmatprep.subr.mxu0 0.0
    %326 = vmatpush2.msra.mxu0 0.0
    %327 = vmatprep.subr.mxu0 0.0
    %328 = vmatpush2.msra.mxu0 0.0
    %329 = vmatprep.subr.mxu0 0.0
    %330 = vmatpush2.msra.mxu0 0.0
    %331 = vmatprep.subr.mxu0 0.0
    %332 = vmatpush2.msra.mxu0 0.0
    %333 = vmatprep.mubr.f32.mxu0 0.0
    %334 = vmatmul.mubr.f32.gmra.mxu0 %v258
    %v335 = vpop.f32.mrf.mxu0
    %v336 = vadd.f32 0.0, %v335
    %v337 = vpop.f32.mrf.mxu0
    %338 = vmatprep.mubr.f32.mxu0 0.0
    %339 = vmatmul.mubr.f32.gmra.mxu0 %v261
    %v340 = vpop.f32.mrf.mxu0
    %v341 = vadd.f32 0.0, %v340
    %v342 = vpop.f32.mrf.mxu0
    %343 = vmatprep.mubr.f32.mxu0 0.0
    %344 = vmatmul.mubr.f32.gmra.mxu0 %v264
    %v345 = vpop.f32.mrf.mxu0
    %v346 = vadd.f32 0.0, %v345
    %v347 = vpop.f32.mrf.mxu0
    %348 = vmatprep.mubr.f32.mxu0 0.0
    %349 = vmatmul.mubr.f32.gmra.mxu0 %v267
    %v350 = vpop.f32.mrf.mxu0
    %v351 = vadd.f32 0.0, %v350
    %v352 = vpop.f32.mrf.mxu0
    %353 = vdwg.mxu0
    %v354 = vld [vmem:[%s1 + $0xd0] sm:$0xff]
    %v355 = vld [vmem:[%s1 + $0xd8] sm:$0xff]
    %v356 = vld [vmem:[%s1 + $0xe0] sm:$0xff]
    %v357 = vld [vmem:[%s1 + $0xe8] sm:$0xff]
    %v358 = vld [vmem:[%s1 + $0xf0] sm:$0xff]
    %v359 = vld [vmem:[%s1 + $0xf8] sm:$0xff]
    %v360 = vld [vmem:[%s1 + $0x100] sm:$0xff]
    %v361 = vld [vmem:[%s1 + $0x108] sm:$0xff]
    %362 = vadd.xlane.f32.xlu0 %v336
    %v363 = vpop.xlane.xlu0 %362
    %364 = vadd.xlane.f32.xlu0 %v341
    %v365 = vpop.xlane.xlu0 %364
    %366 = vadd.xlane.f32.xlu0 %v346
    %v367 = vpop.xlane.xlu0 %366
    %368 = vadd.xlane.f32.xlu0 %v351
    %v369 = vpop.xlane.xlu0 %368
    %v370 = vmul.f32 %v363, %v20
    %v371 = vmul.f32 %v365, %v20
    %v372 = vmul.f32 %v367, %v20
    %v373 = vmul.f32 %v369, %v20
    %v374 = vsub.f32 %v336, %v370
    %v375 = vsub.f32 %v341, %v371
    %v376 = vsub.f32 %v346, %v372
    %v377 = vsub.f32 %v351, %v373
    %v378 = vmul.f32 %v374, %v374
    %v379 = vmul.f32 %v375, %v375
    %v380 = vmul.f32 %v376, %v376
    %v381 = vmul.f32 %v377, %v377
    %382 = vadd.xlane.f32.xlu0 %v378
    %v383 = vpop.xlane.xlu0 %382
    %384 = vadd.xlane.f32.xlu0 %v379
    %v385 = vpop.xlane.xlu0 %384
    %386 = vadd.xlane.f32.xlu0 %v380
    %v387 = vpop.xlane.xlu0 %386
    %388 = vadd.xlane.f32.xlu0 %v381
    %v389 = vpop.xlane.xlu0 %388
    %v390 = vmul.f32 %v383, %v20
    %v391 = vmul.f32 %v385, %v20
    %v392 = vmul.f32 %v387, %v20
    %v393 = vmul.f32 %v389, %v20
    %v394 = vadd.f32 %v390, 1e-05
    %v395 = vadd.f32 %v391, 1e-05
    %v396 = vadd.f32 %v392, 1e-05
    %v397 = vadd.f32 %v393, 1e-05
    %v398 = vrsqrt.pop %v394
    %v399 = vrsqrt.pop %v395
    %v400 = vrsqrt.pop %v396
    %v401 = vrsqrt.pop %v397
    %v402 = vmul.f32 %v398, %v354
    %v403 = vmul.f32 %v399, %v355
    %v404 = vmul.f32 %v400, %v356
    %v405 = vmul.f32 %v401, %v357
    %407 = vset.pattern.permute.xlu0 0
    %408 = vperm.xlu0 %407, %v402
    %v409 = vpop.permute.xlu0 %408
    %412 = vset.pattern.permute.xlu0 0
    %413 = vperm.xlu0 %412, %v403
    %v414 = vpop.permute.xlu0 %413
    %417 = vset.pattern.permute.xlu0 0
    %418 = vperm.xlu0 %417, %v404
    %v419 = vpop.permute.xlu0 %418
    %422 = vset.pattern.permute.xlu0 0
    %423 = vperm.xlu0 %422, %v405
    %v424 = vpop.permute.xlu0 %423
    %v426 = vmul.f32 %v374, %v409
    %v427 = vmul.f32 %v375, %v414
    %v428 = vmul.f32 %v376, %v419
    %v429 = vmul.f32 %v377, %v424
    %431 = vset.pattern.permute.xlu0 0
    %432 = vperm.xlu0 %431, %v358
    %v433 = vpop.permute.xlu0 %432
    %436 = vset.pattern.permute.xlu0 0
    %437 = vperm.xlu0 %436, %v359
    %v438 = vpop.permute.xlu0 %437
    %441 = vset.pattern.permute.xlu0 0
    %442 = vperm.xlu0 %441, %v360
    %v443 = vpop.permute.xlu0 %442
    %446 = vset.pattern.permute.xlu0 0
    %447 = vperm.xlu0 %446, %v361
    %v448 = vpop.permute.xlu0 %447
    %v450 = vadd.f32 %v426, %v433
    %v451 = vadd.f32 %v427, %v438
    %v452 = vadd.f32 %v428, %v443
    %v453 = vadd.f32 %v429, %v448
    %v454 = vmax.f32 %v450, 0.0
    %v455 = vmax.f32 %v451, 0.0
    %v456 = vmax.f32 %v452, 0.0
    %v457 = vmax.f32 %v453, 0.0
    %v458 = vld [vmem:[%s1 + $0x110] sm:$0xff]
    %v459 = vld [vmem:[%s1 + $0x118] sm:$0xff]
    %461 = vset.pattern.permute.xlu0 0
    %462 = vperm.xlu0 %461, %v459
    %v463 = vpop.permute.xlu0 %462
    %v466 = vsel %vm256, %v458, 0
    %468 = vmatprep.subr.mxu0 0.0
    %469 = vmatpush1.msra.mxu0 0.0
    %470 = vmatprep.subr.mxu0 0.0
    %471 = vmatpush1.msra.mxu0 0.0
    %472 = vmatprep.subr.mxu0 0.0
    %473 = vmatpush1.msra.mxu0 0.0
    %474 = vmatprep.subr.mxu0 0.0
    %475 = vmatpush1.msra.mxu0 0.0
    %476 = vmatprep.subr.mxu0 0.0
    %477 = vmatpush1.msra.mxu0 0.0
    %478 = vmatprep.subr.mxu0 0.0
    %479 = vmatpush1.msra.mxu0 0.0
    %480 = vmatprep.subr.mxu0 0.0
    %481 = vmatpush1.msra.mxu0 0.0
    %482 = vmatprep.subr.mxu0 0.0
    %483 = vmatpush1.msra.mxu0 0.0
    %484 = vmatprep.subr.mxu0 0.0
    %485 = vmatpush1.msra.mxu0 0.0
    %486 = vmatprep.subr.mxu0 0.0
    %487 = vmatpush1.msra.mxu0 0.0
    %488 = vmatprep.subr.mxu0 0.0
    %489 = vmatpush1.msra.mxu0 0.0
    %490 = vmatprep.subr.mxu0 0.0
    %491 = vmatpush1.msra.mxu0 0.0
    %492 = vmatprep.subr.mxu0 0.0
    %493 = vmatpush1.msra.mxu0 %v457
    %494 = vmatprep.subr.mxu0 0.0
    %495 = vmatpush1.msra.mxu0 %v456
    %496 = vmatprep.subr.mxu0 0.0
    %497 = vmatpush1.msra.mxu0 %v455
    %498 = vmatprep.subr.mxu0 0.0
    %499 = vmatpush1.msra.mxu0 %v454
    %500 = vmatprep.subr.mxu0 0.0
    %501 = vmatpush2.msra.mxu0 0.0
    %502 = vmatprep.subr.mxu0 0.0
    %503 = vmatpush2.msra.mxu0 0.0
    %504 = vmatprep.subr.mxu0 0.0
    %505 = vmatpush2.msra.mxu0 0.0
    %506 = vmatprep.subr.mxu0 0.0
    %507 = vmatpush2.msra.mxu0 0.0
    %508 = vmatprep.subr.mxu0 0.0
    %509 = vmatpush2.msra.mxu0 0.0
    %510 = vmatprep.subr.mxu0 0.0
    %511 = vmatpush2.msra.mxu0 0.0
    %512 = vmatprep.subr.mxu0 0.0
    %513 = vmatpush2.msra.mxu0 0.0
    %514 = vmatprep.subr.mxu0 0.0
    %515 = vmatpush2.msra.mxu0 0.0
    %516 = vmatprep.subr.mxu0 0.0
    %517 = vmatpush2.msra.mxu0 0.0
    %518 = vmatprep.subr.mxu0 0.0
    %519 = vmatpush2.msra.mxu0 0.0
    %520 = vmatprep.subr.mxu0 0.0
    %521 = vmatpush2.msra.mxu0 0.0
    %522 = vmatprep.subr.mxu0 0.0
    %523 = vmatpush2.msra.mxu0 0.0
    %524 = vmatprep.subr.mxu0 0.0
    %525 = vmatpush2.msra.mxu0 0.0
    %526 = vmatprep.subr.mxu0 0.0
    %527 = vmatpush2.msra.mxu0 0.0
    %528 = vmatprep.subr.mxu0 0.0
    %529 = vmatpush2.msra.mxu0 0.0
    %530 = vmatprep.subr.mxu0 0.0
    %531 = vmatpush2.msra.mxu0 0.0
    %532 = vmatprep.mubr.f32.mxu0 0.0
    %533 = vmatmul.mubr.f32.gmra.mxu0 %v466
    %v534 = vpop.f32.mrf.mxu0
    %v535 = vadd.f32 %v463, %v534
    %v536 = vpop.f32.mrf.mxu0
    %537 = vdwg.mxu0
    %v538 = vmax.f32 %v535, 0.0
    %v539 = vadd.f32 %v535, 2.9957323
    %v540 = vmul.f32 %v539, 1.442695
    %v541 = vpow.pop %v540
    %v543 = vrot.slane %v541, 4
    %v545 = vmul.f32 %v12, %v543
    %v546 = vadd.f32 %v545, %v538
    %v547 = vmul.f32 %v546, %v546
    %v548 = vadd.f32 %v547, 1.0
    %v549 = vrcp.pop %v548
    %v550 = vmul.f32 %v548, %v549
    %v551 = vsub.f32 2.0, %v550
    %v552 = vmul.f32 %v549, %v551
    %v553 = vand.u32 2147483647, %v546
    %vm554 = vcmp.gt.f32.partialorder %v553, 2.4142137
    %vm555 = vcmp.gt.f32.partialorder %v553, 0.41421357
    %v556 = vsel %vm555, 0.7853982, 0.0
    %v557 = vsel %vm554, 1.5707964, %v556
    %v558 = vsub.f32 %v553, 1.0
    %v559 = vsel %vm555, %v558, %v553
    %v560 = vsel %vm554, -1.0, %v559
    %v561 = vadd.f32 %v553, 1.0
    %v562 = vsel %vm555, %v561, 1.0
    %v563 = vsel %vm554, %v553, %v562
    %v564 = vrcp.pop %v563
    %v565 = vmul.f32 %v563, %v564
    %v566 = vsub.f32 2.0, %v565
    %v567 = vmul.f32 %v564, %v566
    %v568 = vmul.f32 %v560, %v567
    %v569 = vmul.f32 %v568, %v568
    %v570 = vmul.f32 %v569, 0.080537446
    %v571 = vsub.f32 %v570, 0.13877685
    %v572 = vmul.f32 %v571, %v569
    %v573 = vadd.f32 %v572, 0.19977711
    %v574 = vmul.f32 %v573, %v569
    %v575 = vsub.f32 %v574, 0.3333295
    %v576 = vmul.f32 %v575, %v569
    %v577 = vmul.f32 %v576, %v568
    %v578 = vadd.f32 %v577, %v568
    %v579 = vadd.f32 %v557, %v578
    %vm580 = vcmp.lt.f32.partialorder %v546, 0.0
    %v581 = vsub.f32 0.0, %v579
    %v582 = vsel %vm580, %v581, %v579
    %v583 = vmul.f32 %v582, 0.63661975
    %v584 = vsel %vm16, %v535, 0.0
    %v585 = vrot.slane %v584, 4
    %v586 = vadd.f32 %v584, %v585
    %v587 = vrot.slane %v586, 2
    %v588 = vadd.f32 %v586, %v587
    %v589 = vrot.slane %v588, 1
    %v590 = vadd.f32 %v588, %v589
    %v591 = vadd.f32 %v590, 11.982929
    %v592 = vmul.f32 %v591, 1.442695
    %v593 = vpow.pop %v592
    %v595 = vrot.slane %v552, 1
    %v597 = vmul.f32 %v552, %v595
    %v598 = vrot.slane %v552, 2
    %v600 = vmul.f32 %v597, %v598
    %v601 = vrot.slane %v552, 3
    %v603 = vmul.f32 %v600, %v601
    %v604 = vmul.f32 %v593, 0.63661975
    %v605 = vmul.f32 %v13, %v604
    %v607 = vrot.slane %v603, 4
    %v609 = vmul.f32 %v605, %v607
    %610 = vst [vmem:[#allocation2] sm:$0xf] %v12
    %611 = vst [vmem:[#allocation2] sm:$0xf0] %v583
    %612 = vst [vmem:[#allocation2 + $0x8] sm:$0x1] %v609
    // Predicated region
    $region10: #{forward.1} parent=1 // pred_check
      _
    $region11: #{forward.1} parent=1 // pred_check_branch
      %614 = sbr.rel (0) target = $region13
    $region12: #{forward.1} parent=1 // pred_region
      %s616 = ssub.s32 256, 256
      %617 = vsyncadd [#allocation3], %s616
      %s618 = sshll.u32 [#allocation2], 4
      %s619 = int_to_ptr.vmem [resolvable:$true] %s618
      %624 = dma.vmem_to_hbm [thread:$0]  %s619, 256, %s2, [#allocation3], 128, 128, 8
    $region13: #{forward.1} parent=1 // pred_fallthru
      _
    // Predicated region
    $region14: #{forward.1} parent=1 // pred_check
      _
    $region15: #{forward.1} parent=1 // pred_check_branch
      %626 = sbr.rel (0) target = $region17
    $region16: #{forward.1} parent=1 // pred_region
      %627 = dma.done [#allocation3], 256
    $region17: #{forward.1} parent=1 // pred_fallthru
      _
    %628 = vsyncpa [#allocation3], 1

</llo_original>
